<compile_context>
chip_gen: v7x
topology: tpu7x:2x2x1
jax: 0.10.0
libtpu: 0.0.40
codegen_flags: <defaults>
</compile_context>

<pallas_src>
import functools

import jax
import jax.numpy as jnp
from jax.experimental import pallas as pl
from jax.experimental.pallas import tpu as pltpu

OBS_DIM = 4        # CartPole-v0 observation_space.shape[0]
HIDDEN = 128
N_ACTIONS = 2      # CartPole-v0 action_space.n
LANE = 128         # final layer padded to a full lane width (lane-dense stores)


def _round_up(x, m):
    return (x + m - 1) // m * m


# --------------------------------------------------------------------------- #
# Kernel bodies
# --------------------------------------------------------------------------- #
def _mlp(x, w1, b1, w2, b2, w3, b3):
    """Shared forward math. x: (TB, OBS_DIM) f32 -> (TB, LANE) f32 q-values
    (only the first N_ACTIONS lanes are meaningful; the rest are bias-pad 0)."""
    # Layer 1: K=4 contraction -> 4 VPU broadcast-FMAs (f32), no MXU.
    h1 = jnp.broadcast_to(b1, (x.shape[0], HIDDEN))
    for k in range(OBS_DIM):
        h1 = h1 + x[:, k:k + 1] * w1[k:k + 1, :]
    h1 = jnp.maximum(h1, 0.0)
    # Layers 2/3: bf16 MXU matmuls, f32 accumulation; elementwise stays f32.
    h2 = jnp.dot(h1.astype(jnp.bfloat16), w2, preferred_element_type=jnp.float32)
    h2 = jnp.maximum(h2 + b2, 0.0)
    q = jnp.dot(h2.astype(jnp.bfloat16), w3, preferred_element_type=jnp.float32)
    return q + b3


def dqn_mlp_kernel(x_ref, w1_ref, b1_ref, w2_ref, b2_ref, w3_ref, b3_ref, out_ref):
    out_ref[...] = _mlp(x_ref[...], w1_ref[...], b1_ref[...], w2_ref[...],
                        b2_ref[...], w3_ref[...], b3_ref[...])


def dqn_td_kernel(gamma, s_ref, ns_ref, a_ref, r_ref, d_ref,
                  w1_ref, b1_ref, w2_ref, b2_ref, w3_ref, b3_ref, sqerr_ref):
    """Fused train_step forward: Q(s), Q(s'), gather Q(s,a), TD target, (td)^2."""
    tb = s_ref.shape[0]
    w = (w1_ref[...], b1_ref[...], w2_ref[...], b2_ref[...], w3_ref[...], b3_ref[...])
    # Stack state / next_state along the batch axis so both forward passes run
    # through the same (2*TB)-row MXU matmuls.
    x_both = jnp.concatenate([s_ref[...], ns_ref[...]], axis=0)   # (2*TB, OBS)
    q_both = _mlp(x_both, *w)                                      # (2*TB, LANE)
    q = q_both[:tb, :]                                             # Q(s)
    nq = q_both[tb:, :]                                            # Q(s')

    lane = jax.lax.broadcasted_iota(jnp.int32, q.shape, 1)
    # q_values.gather(1, action)
    q_sa = jnp.sum(jnp.where(lane == a_ref[...], q, 0.0), axis=1, keepdims=True)
    # next_q_values.max(1)[0] over the *valid* action lanes only
    next_q = jnp.max(jnp.where(lane < N_ACTIONS, nq, -jnp.inf), axis=1,
                     keepdims=True)

    expected = r_ref[...] + gamma * next_q * (1.0 - d_ref[...])
    td = q_sa - expected
    sqerr_ref[...] = td * td


# --------------------------------------------------------------------------- #
# Wrappers
# --------------------------------------------------------------------------- #
def _const_spec(shape):
    # Weight/bias block: same block for every grid step -> stays VMEM-resident.
    return pl.BlockSpec(shape, lambda i: (0,) * len(shape))


def _batch_tiling(batch, batch_tile):
    tb = min(batch_tile, _round_up(batch, 8))   # sublane-aligned batch tile
    bp = _round_up(batch, tb)
    return tb, bp


def dqn_forward(x, packed_params, *, batch_tile=512):
    """Q-values for a batch of states. Returns (B, N_ACTIONS) float32."""
    w1, b1, w2, b2, w3, b3 = packed_params
    B = x.shape[0]
    tb, bp = _batch_tiling(B, batch_tile)
    if bp != B:
        x = jnp.pad(x, ((0, bp - B), (0, 0)))

    q = pl.pallas_call(
        dqn_mlp_kernel,
        out_shape=jax.ShapeDtypeStruct((bp, LANE), jnp.float32),
        grid=(bp // tb,),
        in_specs=[
            pl.BlockSpec((tb, OBS_DIM), lambda i: (i, 0)),
            _const_spec((OBS_DIM, HIDDEN)),
            _const_spec((1, HIDDEN)),
            _const_spec((HIDDEN, HIDDEN)),
            _const_spec((1, HIDDEN)),
            _const_spec((HIDDEN, LANE)),
            _const_spec((1, LANE)),
        ],
        out_specs=pl.BlockSpec((tb, LANE), lambda i: (i, 0)),
        compiler_params=pltpu.CompilerParams(dimension_semantics=("parallel",)),
    )(x, w1, b1, w2, b2, w3, b3)
    return q[:B, :N_ACTIONS]


def dqn_td_loss(state, action, reward, next_state, done, packed_params,
                *, gamma=0.99, batch_tile=512):
    """Fused forward of DQN.train_step's loss value (MSE of TD error)."""
    w1, b1, w2, b2, w3, b3 = packed_params
    B = state.shape[0]
    tb, bp = _batch_tiling(B, batch_tile)
    pad = bp - B
    if pad:
        state = jnp.pad(state, ((0, pad), (0, 0)))
        next_state = jnp.pad(next_state, ((0, pad), (0, 0)))
        action = jnp.pad(action, ((0, pad),))
        reward = jnp.pad(reward, ((0, pad),))
        done = jnp.pad(done, ((0, pad),))

    a2 = action.astype(jnp.int32).reshape(bp, 1)
    r2 = reward.astype(jnp.float32).reshape(bp, 1)
    d2 = done.astype(jnp.float32).reshape(bp, 1)

    sqerr = pl.pallas_call(
        functools.partial(dqn_td_kernel, float(gamma)),
        out_shape=jax.ShapeDtypeStruct((bp, 1), jnp.float32),
        grid=(bp // tb,),
        in_specs=[
            pl.BlockSpec((tb, OBS_DIM), lambda i: (i, 0)),   # state
            pl.BlockSpec((tb, OBS_DIM), lambda i: (i, 0)),   # next_state
            pl.BlockSpec((tb, 1), lambda i: (i, 0)),         # action
            pl.BlockSpec((tb, 1), lambda i: (i, 0)),         # reward
            pl.BlockSpec((tb, 1), lambda i: (i, 0)),         # done
            _const_spec((OBS_DIM, HIDDEN)),
            _const_spec((1, HIDDEN)),
            _const_spec((HIDDEN, HIDDEN)),
            _const_spec((1, HIDDEN)),
            _const_spec((HIDDEN, LANE)),
            _const_spec((1, LANE)),
        ],
        out_specs=pl.BlockSpec((tb, 1), lambda i: (i, 0)),
        compiler_params=pltpu.CompilerParams(dimension_semantics=("parallel",)),
    )(state, next_state, a2, r2, d2, w1, b1, w2, b2, w3, b3)
    return jnp.mean(sqerr[:B, 0])
    # TODO(synk): loss.backward() + Adam optimizer.step() (autodiff/update) are
    # not implemented as Pallas kernels; only the forward/loss-value math is fused.


# --------------------------------------------------------------------------- #
# Parameters & pure-JAX reference
# --------------------------------------------------------------------------- #
def init_params(key):
    """PyTorch-Linear-style init: U(-1/sqrt(fan_in), +1/sqrt(fan_in))."""
    def linear(k, fan_in, fan_out):
        kw, kb = jax.random.split(k)
        bound = 1.0 / jnp.sqrt(jnp.float32(fan_in))
        w = jax.random.uniform(kw, (fan_in, fan_out), jnp.float32, -bound, bound)
        b = jax.random.uniform(kb, (1, fan_out), jnp.float32, -bound, bound)
        return w, b

    k1, k2, k3 = jax.random.split(key, 3)
    w1, b1 = linear(k1, OBS_DIM, HIDDEN)
    w2, b2 = linear(k2, HIDDEN, HIDDEN)
    w3, b3 = linear(k3, HIDDEN, N_ACTIONS)
    return (w1, b1, w2, b2, w3, b3)


def pack_params(params):
    """Kernel layout: w2/w3 in bf16 (MXU operands), w3/b3 zero-padded to LANE."""
    w1, b1, w2, b2, w3, b3 = params
    w3p = jnp.zeros((HIDDEN, LANE), jnp.float32).at[:, :N_ACTIONS].set(w3)
    b3p = jnp.zeros((1, LANE), jnp.float32).at[:, :N_ACTIONS].set(b3)
    return (w1, b1,
            w2.astype(jnp.bfloat16), b2,
            w3p.astype(jnp.bfloat16), b3p)


def reference_forward(x, params):
    """Pure-JAX reference with the same bf16-operand / f32-accumulate math."""
    w1, b1, w2, b2, w3, b3 = params
    h1 = jnp.maximum(x @ w1 + b1, 0.0)
    h2 = jnp.dot(h1.astype(jnp.bfloat16), w2.astype(jnp.bfloat16),
                 preferred_element_type=jnp.float32) + b2
    h2 = jnp.maximum(h2, 0.0)
    return jnp.dot(h2.astype(jnp.bfloat16), w3.astype(jnp.bfloat16),
                   preferred_element_type=jnp.float32) + b3


def reference_td_loss(state, action, reward, next_state, done, params, gamma=0.99):
    q = reference_forward(state, params)
    nq = reference_forward(next_state, params)
    q_sa = jnp.take_along_axis(q, action.astype(jnp.int32)[:, None], axis=1)[:, 0]
    next_q = jnp.max(nq, axis=1)
    expected = reward + gamma * next_q * (1.0 - done)
    return jnp.mean((q_sa - expected) ** 2)


# --------------------------------------------------------------------------- #
if __name__ == "__main__":
    key = jax.random.PRNGKey(0)
    kx, kp, ka, kr, kd, kn = jax.random.split(key, 6)

    B = 32  # train_step batch_size
    params = init_params(kp)
    packed = pack_params(params)

    # --- batched forward (self(state)) ---
    x = jax.random.normal(kx, (B, OBS_DIM), jnp.float32)
    q = jax.block_until_ready(dqn_forward(x, packed))
    q_ref = reference_forward(x, params)
    assert q.shape == (B, N_ACTIONS)
    assert jnp.allclose(q, q_ref, atol=5e-3, rtol=5e-3), "forward mismatch"

    # --- single-state forward (predict() path, exercises batch padding) ---
    q1 = jax.block_until_ready(dqn_forward(x[:1], packed))
    assert jnp.allclose(q1, q_ref[:1], atol=5e-3, rtol=5e-3), "B=1 forward mismatch"

    # --- fused train_step loss forward ---
    next_state = jax.random.normal(kn, (B, OBS_DIM), jnp.float32)
    action = jax.random.randint(ka, (B,), 0, N_ACTIONS)
    reward = jax.random.uniform(kr, (B,), jnp.float32)
    done = (jax.random.uniform(kd, (B,), jnp.float32) < 0.1).astype(jnp.float32)

    loss = jax.block_until_ready(
        dqn_td_loss(x, action, reward, next_state, done, packed))
    loss_ref = reference_td_loss(x, action, reward, next_state, done, params)
    assert jnp.allclose(loss, loss_ref, atol=5e-3, rtol=5e-3), "TD loss mismatch"

    print("KERNEL_OK")
</pallas_src>

<mosaic_0001>
module attributes {stable_mosaic.version = 11 : i64} {
  func.func @dqn_mlp_kernel(%arg0: i32, %arg1: memref<32x4xf32, #tpu.memory_space<vmem>>, %arg2: memref<4x128xf32, #tpu.memory_space<vmem>>, %arg3: memref<1x128xf32, #tpu.memory_space<vmem>>, %arg4: memref<128x128xbf16, #tpu.memory_space<vmem>>, %arg5: memref<1x128xf32, #tpu.memory_space<vmem>>, %arg6: memref<128x128xbf16, #tpu.memory_space<vmem>>, %arg7: memref<1x128xf32, #tpu.memory_space<vmem>>, %arg8: memref<32x128xf32, #tpu.memory_space<vmem>>) attributes {dimension_semantics = [#tpu.dimension_semantics<parallel>], iteration_bounds = array<i64: 1>, scalar_prefetch = 0 : i64, scratch_operands = 0 : i64, tpu.core_type = #tpu.core_type<tc>, window_params = [{transform_indices = @transform_0, window_bounds = array<i64: 32, 4>}, {pipeline_mode = #tpu.pipeline_mode<synchronous>, transform_indices = @transform_1, window_bounds = array<i64: 4, 128>}, {pipeline_mode = #tpu.pipeline_mode<synchronous>, transform_indices = @transform_2, window_bounds = array<i64: 1, 128>}, {pipeline_mode = #tpu.pipeline_mode<synchronous>, transform_indices = @transform_3, window_bounds = array<i64: 128, 128>}, {pipeline_mode = #tpu.pipeline_mode<synchronous>, transform_indices = @transform_4, window_bounds = array<i64: 1, 128>}, {pipeline_mode = #tpu.pipeline_mode<synchronous>, transform_indices = @transform_5, window_bounds = array<i64: 128, 128>}, {pipeline_mode = #tpu.pipeline_mode<synchronous>, transform_indices = @transform_6, window_bounds = array<i64: 1, 128>}, {transform_indices = @transform_7, window_bounds = array<i64: 32, 128>}]} {
    %c0 = arith.constant 0 : index
    %c0_0 = arith.constant 0 : index
    %0 = vector.load %arg1[%c0, %c0_0] : memref<32x4xf32, #tpu.memory_space<vmem>>, vector<32x4xf32>
    %c0_1 = arith.constant 0 : index
    %c0_2 = arith.constant 0 : index
    %1 = vector.load %arg2[%c0_1, %c0_2] : memref<4x128xf32, #tpu.memory_space<vmem>>, vector<4x128xf32>
    %c0_3 = arith.constant 0 : index
    %c0_4 = arith.constant 0 : index
    %2 = vector.load %arg3[%c0_3, %c0_4] : memref<1x128xf32, #tpu.memory_space<vmem>>, vector<1x128xf32>
    %c0_5 = arith.constant 0 : index
    %c0_6 = arith.constant 0 : index
    %3 = vector.load %arg4[%c0_5, %c0_6] : memref<128x128xbf16, #tpu.memory_space<vmem>>, vector<128x128xbf16>
    %c0_7 = arith.constant 0 : index
    %c0_8 = arith.constant 0 : index
    %4 = vector.load %arg5[%c0_7, %c0_8] : memref<1x128xf32, #tpu.memory_space<vmem>>, vector<1x128xf32>
    %c0_9 = arith.constant 0 : index
    %c0_10 = arith.constant 0 : index
    %5 = vector.load %arg6[%c0_9, %c0_10] : memref<128x128xbf16, #tpu.memory_space<vmem>>, vector<128x128xbf16>
    %c0_11 = arith.constant 0 : index
    %c0_12 = arith.constant 0 : index
    %6 = vector.load %arg7[%c0_11, %c0_12] : memref<1x128xf32, #tpu.memory_space<vmem>>, vector<1x128xf32>
    %7 = vector.shape_cast %2 : vector<1x128xf32> to vector<1x128xf32>
    %8 = vector.broadcast %7 : vector<1x128xf32> to vector<32x128xf32>
    %9 = vector.extract_strided_slice %0 {offsets = [0, 0], sizes = [32, 1], strides = [1, 1]} : vector<32x4xf32> to vector<32x1xf32>
    %10 = vector.extract_strided_slice %1 {offsets = [0, 0], sizes = [1, 128], strides = [1, 1]} : vector<4x128xf32> to vector<1x128xf32>
    %11 = vector.broadcast %9 : vector<32x1xf32> to vector<32x128xf32>
    %12 = vector.broadcast %10 : vector<1x128xf32> to vector<32x128xf32>
    %13 = arith.mulf %11, %12 : vector<32x128xf32>
    %14 = arith.addf %8, %13 : vector<32x128xf32>
    %15 = vector.extract_strided_slice %0 {offsets = [0, 1], sizes = [32, 1], strides = [1, 1]} : vector<32x4xf32> to vector<32x1xf32>
    %16 = vector.extract_strided_slice %1 {offsets = [1, 0], sizes = [1, 128], strides = [1, 1]} : vector<4x128xf32> to vector<1x128xf32>
    %17 = vector.broadcast %15 : vector<32x1xf32> to vector<32x128xf32>
    %18 = vector.broadcast %16 : vector<1x128xf32> to vector<32x128xf32>
    %19 = arith.mulf %17, %18 : vector<32x128xf32>
    %20 = arith.addf %14, %19 : vector<32x128xf32>
    %21 = vector.extract_strided_slice %0 {offsets = [0, 2], sizes = [32, 1], strides = [1, 1]} : vector<32x4xf32> to vector<32x1xf32>
    %22 = vector.extract_strided_slice %1 {offsets = [2, 0], sizes = [1, 128], strides = [1, 1]} : vector<4x128xf32> to vector<1x128xf32>
    %23 = vector.broadcast %21 : vector<32x1xf32> to vector<32x128xf32>
    %24 = vector.broadcast %22 : vector<1x128xf32> to vector<32x128xf32>
    %25 = arith.mulf %23, %24 : vector<32x128xf32>
    %26 = arith.addf %20, %25 : vector<32x128xf32>
    %27 = vector.extract_strided_slice %0 {offsets = [0, 3], sizes = [32, 1], strides = [1, 1]} : vector<32x4xf32> to vector<32x1xf32>
    %28 = vector.extract_strided_slice %1 {offsets = [3, 0], sizes = [1, 128], strides = [1, 1]} : vector<4x128xf32> to vector<1x128xf32>
    %29 = vector.broadcast %27 : vector<32x1xf32> to vector<32x128xf32>
    %30 = vector.broadcast %28 : vector<1x128xf32> to vector<32x128xf32>
    %31 = arith.mulf %29, %30 : vector<32x128xf32>
    %32 = arith.addf %26, %31 : vector<32x128xf32>
    %cst = arith.constant 0.000000e+00 : f32
    %33 = vector.broadcast %cst : f32 to vector<32x128xf32>
    %34 = arith.maximumf %32, %33 : vector<32x128xf32>
    %35 = arith.truncf %34 : vector<32x128xf32> to vector<32x128xbf16>
    %cst_13 = arith.constant dense<0.000000e+00> : vector<32x128xf32>
    %36 = tpu.matmul %35, %3, %cst_13 {dimension_numbers = #tpu.dot_dimension_numbers<[1], [0], [0], [1], [0, 0, 1, 1], [], []>} : vector<32x128xbf16>, vector<128x128xbf16>, vector<32x128xf32> -> vector<32x128xf32>
    %37 = vector.broadcast %4 : vector<1x128xf32> to vector<32x128xf32>
    %38 = arith.addf %36, %37 : vector<32x128xf32>
    %cst_14 = arith.constant 0.000000e+00 : f32
    %39 = vector.broadcast %cst_14 : f32 to vector<32x128xf32>
    %40 = arith.maximumf %38, %39 : vector<32x128xf32>
    %41 = arith.truncf %40 : vector<32x128xf32> to vector<32x128xbf16>
    %cst_15 = arith.constant dense<0.000000e+00> : vector<32x128xf32>
    %42 = tpu.matmul %41, %5, %cst_15 {dimension_numbers = #tpu.dot_dimension_numbers<[1], [0], [0], [1], [0, 0, 1, 1], [], []>} : vector<32x128xbf16>, vector<128x128xbf16>, vector<32x128xf32> -> vector<32x128xf32>
    %43 = vector.broadcast %6 : vector<1x128xf32> to vector<32x128xf32>
    %44 = arith.addf %42, %43 : vector<32x128xf32>
    %c0_16 = arith.constant 0 : index
    %c0_17 = arith.constant 0 : index
    %45 = vector.load %arg8[%c0_16, %c0_17] : memref<32x128xf32, #tpu.memory_space<vmem>>, vector<32x128xf32>
    tpu.vector_store %arg8[%c0_16, %c0_17], %44 {strides = array<i32>} : memref<32x128xf32, #tpu.memory_space<vmem>>, vector<32x128xf32>,
    return
  }
  func.func @transform_0(%arg0: i32) -> (i32, i32) {
    %c0_i32 = arith.constant 0 : i32
    %c0_i32_0 = arith.constant 0 : i32
    return %arg0, %c0_i32 : i32, i32
  }
  func.func @transform_1(%arg0: i32) -> (i32, i32) {
    %c0_i32 = arith.constant 0 : i32
    %c0_i32_0 = arith.constant 0 : i32
    %c0_i32_1 = arith.constant 0 : i32
    return %c0_i32, %c0_i32_0 : i32, i32
  }
  func.func @transform_2(%arg0: i32) -> (i32, i32) {
    %c0_i32 = arith.constant 0 : i32
    %c0_i32_0 = arith.constant 0 : i32
    %c0_i32_1 = arith.constant 0 : i32
    return %c0_i32, %c0_i32_0 : i32, i32
  }
  func.func @transform_3(%arg0: i32) -> (i32, i32) {
    %c0_i32 = arith.constant 0 : i32
    %c0_i32_0 = arith.constant 0 : i32
    %c0_i32_1 = arith.constant 0 : i32
    return %c0_i32, %c0_i32_0 : i32, i32
  }
  func.func @transform_4(%arg0: i32) -> (i32, i32) {
    %c0_i32 = arith.constant 0 : i32
    %c0_i32_0 = arith.constant 0 : i32
    %c0_i32_1 = arith.constant 0 : i32
    return %c0_i32, %c0_i32_0 : i32, i32
  }
  func.func @transform_5(%arg0: i32) -> (i32, i32) {
    %c0_i32 = arith.constant 0 : i32
    %c0_i32_0 = arith.constant 0 : i32
    %c0_i32_1 = arith.constant 0 : i32
    return %c0_i32, %c0_i32_0 : i32, i32
  }
  func.func @transform_6(%arg0: i32) -> (i32, i32) {
    %c0_i32 = arith.constant 0 : i32
    %c0_i32_0 = arith.constant 0 : i32
    %c0_i32_1 = arith.constant 0 : i32
    return %c0_i32, %c0_i32_0 : i32, i32
  }
  func.func @transform_7(%arg0: i32) -> (i32, i32) {
    %c0_i32 = arith.constant 0 : i32
    %c0_i32_0 = arith.constant 0 : i32
    return %arg0, %c0_i32 : i32, i32
  }
}

</mosaic_0001>

<llo_original>
// kernel: tpu_custom_call.1
$region0: #{tpu_custom_call.1}
  #allocation0 [shape = 'u32[]', space=smem, size = 0x4, offset = 0x4, fixed_abs, tag = 'smem constant byte address 0x4 - core index']
  #allocation1 [shape = 'u32[144,128]{1,0:T(1,128)}', space=vmem, size = 0x12000, scoped, tag = 'internal scratch']
  %s0 = inlined_call_operand.vmem [shape: f32[32,4], index: 0, kind: input, shape index: {}]
  %s1 = inlined_call_operand.vmem [shape: f32[4,128], index: 1, kind: input, shape index: {}]
  %s2 = inlined_call_operand.vmem [shape: f32[1,128], index: 2, kind: input, shape index: {}]
  %s3 = inlined_call_operand.hbm [shape: bf16[128,128], index: 3, kind: input, shape index: {}]
  %s4 = inlined_call_operand.vmem [shape: f32[1,128], index: 4, kind: input, shape index: {}]
  %s5 = inlined_call_operand.hbm [shape: bf16[128,128], index: 5, kind: input, shape index: {}]
  %s6 = inlined_call_operand.vmem [shape: f32[1,128], index: 6, kind: input, shape index: {}]
  %s7 = inlined_call_operand.hbm [shape: f32[32,128], index: 7, kind: output, shape index: {}]
  %s8 = sld [smem:[#allocation0]]
  $region46: #{tpu_custom_call.1} parent=0
    _
  %s10 = ssub.s32 1, %s8
  %s11 = scalar_select 0, %s10, %s8
  $region1: #{tpu_custom_call.1} parent=0
    #allocation2 [shape = 'u8[32768]{0}', space=vmem, size = 0x8000, scoped, tag = 'input window, operand 3, single buffered']
    #allocation3 [shape = 's32[1]{0}', space=sflag, size = 0x4, scoped, tag = 'scoped memory for tpu_custom_call.1']
    #allocation4 [shape = 's32[1]{0}', space=sflag, size = 0x4, scoped, tag = 'scoped memory for tpu_custom_call.1']
    #allocation5 [shape = 'u8[32768]{0}', space=vmem, size = 0x8000, scoped, tag = 'input window, operand 5, single buffered']
    #allocation6 [shape = 's32[1]{0}', space=sflag, size = 0x4, scoped, tag = 'scoped memory for tpu_custom_call.1']
    #allocation7 [shape = 'u8[16384]{0}', space=vmem, size = 0x4000, scoped, tag = 'output window, operand 0, single buffered']
    %12 = vsyncpa [#allocation3], 0
    %13 = vsyncpa [#allocation6], 0
    %14 = vsyncpa [#allocation4], 0
    // Predicated region
    $region2: #{tpu_custom_call.1} parent=1 // pred_check
      _
    $region3: #{tpu_custom_call.1} parent=1 // pred_check_branch
      %16 = sbr.rel (0) target = $region5
    $region4: #{tpu_custom_call.1} parent=1 // pred_region
      _
    $region5: #{tpu_custom_call.1} parent=1 // pred_fallthru
      _
    // Predicated region
    $region6: #{tpu_custom_call.1} parent=1 // pred_check
      _
    $region7: #{tpu_custom_call.1} parent=1 // pred_check_branch
      %18 = sbr.rel (0) target = $region9
    $region8: #{tpu_custom_call.1} parent=1 // pred_region
      _
    $region9: #{tpu_custom_call.1} parent=1 // pred_fallthru
      _
    // Predicated region
    $region10: #{tpu_custom_call.1} parent=1 // pred_check
      _
    $region11: #{tpu_custom_call.1} parent=1 // pred_check_branch
      %20 = sbr.rel (0) target = $region13
    $region12: #{tpu_custom_call.1} parent=1 // pred_region
      _
    $region13: #{tpu_custom_call.1} parent=1 // pred_fallthru
      _
    // Predicated region
    $region14: #{tpu_custom_call.1} parent=1 // pred_check
      _
    $region15: #{tpu_custom_call.1} parent=1 // pred_check_branch
      %22 = sbr.rel (0) target = $region17
    $region16: #{tpu_custom_call.1} parent=1 // pred_region
      %s24 = ssub.s32 1024, 1024
      %25 = vsyncadd [#allocation3], %s24
      %s26 = sshll.u32 [#allocation2], 4
      %s27 = int_to_ptr.vmem [resolvable:$true] %s26
      %32 = dma.hbm_to_vmem [thread:$0]  %s3, 1024, %s27, [#allocation3], 64, 64, 4
    $region17: #{tpu_custom_call.1} parent=1 // pred_fallthru
      _
    // Predicated region
    $region18: #{tpu_custom_call.1} parent=1 // pred_check
      _
    $region19: #{tpu_custom_call.1} parent=1 // pred_check_branch
      %34 = sbr.rel (0) target = $region21
    $region20: #{tpu_custom_call.1} parent=1 // pred_region
      _
    $region21: #{tpu_custom_call.1} parent=1 // pred_fallthru
      _
    // Predicated region
    $region22: #{tpu_custom_call.1} parent=1 // pred_check
      _
    $region23: #{tpu_custom_call.1} parent=1 // pred_check_branch
      %36 = sbr.rel (0) target = $region25
    $region24: #{tpu_custom_call.1} parent=1 // pred_region
      %s38 = ssub.s32 1024, 1024
      %39 = vsyncadd [#allocation6], %s38
      %s40 = sshll.u32 [#allocation5], 4
      %s41 = int_to_ptr.vmem [resolvable:$true] %s40
      %46 = dma.hbm_to_vmem [thread:$0]  %s5, 1024, %s41, [#allocation6], 64, 64, 4
    $region25: #{tpu_custom_call.1} parent=1 // pred_fallthru
      _
    // Predicated region
    $region26: #{tpu_custom_call.1} parent=1 // pred_check
      _
    $region27: #{tpu_custom_call.1} parent=1 // pred_check_branch
      %48 = sbr.rel (0) target = $region29
    $region28: #{tpu_custom_call.1} parent=1 // pred_region
      _
    $region29: #{tpu_custom_call.1} parent=1 // pred_fallthru
      _
    // Predicated region
    $region30: #{tpu_custom_call.1} parent=1 // pred_check
      _
    $region31: #{tpu_custom_call.1} parent=1 // pred_check_branch
      %50 = sbr.rel (0) target = $region33
    $region32: #{tpu_custom_call.1} parent=1 // pred_region
      %51 = dma.done [#allocation3], 1024
    $region33: #{tpu_custom_call.1} parent=1 // pred_fallthru
      _
    // Predicated region
    $region34: #{tpu_custom_call.1} parent=1 // pred_check
      _
    $region35: #{tpu_custom_call.1} parent=1 // pred_check_branch
      %53 = sbr.rel (0) target = $region37
    $region36: #{tpu_custom_call.1} parent=1 // pred_region
      %54 = dma.done [#allocation6], 1024
    $region37: #{tpu_custom_call.1} parent=1 // pred_fallthru
      _
    %v56 = vld [vmem:[%s0] sm:$0xff]
    %v57 = vld [vmem:[%s0 + $0x8] sm:$0xff]
    %v58 = vld [vmem:[%s0 + $0x10] sm:$0xff]
    %v59 = vld [vmem:[%s0 + $0x18] sm:$0xff]
    %v60 = vld [vmem:[%s1] sm:$0xf]
    %v61 = vld [vmem:[%s2] sm:$0x1]
    %v62 = vld [vmem:[#allocation2] sm:$0xf]
    %v63 = vld [vmem:[#allocation2 + $0x4] sm:$0xf]
    %v64 = vld [vmem:[#allocation2 + $0x8] sm:$0xf]
    %v65 = vld [vmem:[#allocation2 + $0xc] sm:$0xf]
    %v66 = vld [vmem:[#allocation2 + $0x10] sm:$0xf]
    %v67 = vld [vmem:[#allocation2 + $0x14] sm:$0xf]
    %v68 = vld [vmem:[#allocation2 + $0x18] sm:$0xf]
    %v69 = vld [vmem:[#allocation2 + $0x1c] sm:$0xf]
    %v70 = vld [vmem:[#allocation2 + $0x20] sm:$0xf]
    %v71 = vld [vmem:[#allocation2 + $0x24] sm:$0xf]
    %v72 = vld [vmem:[#allocation2 + $0x28] sm:$0xf]
    %v73 = vld [vmem:[#allocation2 + $0x2c] sm:$0xf]
    %v74 = vld [vmem:[#allocation2 + $0x30] sm:$0xf]
    %v75 = vld [vmem:[#allocation2 + $0x34] sm:$0xf]
    %v76 = vld [vmem:[#allocation2 + $0x38] sm:$0xf]
    %v77 = vld [vmem:[#allocation2 + $0x3c] sm:$0xf]
    %v78 = vld [vmem:[%s4] sm:$0x1]
    %v79 = vld [vmem:[#allocation5] sm:$0xf]
    %v80 = vld [vmem:[#allocation5 + $0x4] sm:$0xf]
    %v81 = vld [vmem:[#allocation5 + $0x8] sm:$0xf]
    %v82 = vld [vmem:[#allocation5 + $0xc] sm:$0xf]
    %v83 = vld [vmem:[#allocation5 + $0x10] sm:$0xf]
    %v84 = vld [vmem:[#allocation5 + $0x14] sm:$0xf]
    %v85 = vld [vmem:[#allocation5 + $0x18] sm:$0xf]
    %v86 = vld [vmem:[#allocation5 + $0x1c] sm:$0xf]
    %v87 = vld [vmem:[#allocation5 + $0x20] sm:$0xf]
    %v88 = vld [vmem:[#allocation5 + $0x24] sm:$0xf]
    %v89 = vld [vmem:[#allocation5 + $0x28] sm:$0xf]
    %v90 = vld [vmem:[#allocation5 + $0x2c] sm:$0xf]
    %v91 = vld [vmem:[#allocation5 + $0x30] sm:$0xf]
    %v92 = vld [vmem:[#allocation5 + $0x34] sm:$0xf]
    %v93 = vld [vmem:[#allocation5 + $0x38] sm:$0xf]
    %v94 = vld [vmem:[#allocation5 + $0x3c] sm:$0xf]
    %v95 = vld [vmem:[%s6] sm:$0x1]
    %v97 = vlaneseq
    %v98 = vshrl.u32 %v97, 7
    %v99 = vsub.s32 0, %v98
    %v100 = vrot.slane %v61, %v99
    %103 = vset.pattern.permute.xlu0 0
    %104 = vperm.xlu0 %103, %v56
    %v105 = vpop.permute.xlu0 %104
    %108 = vset.pattern.permute.xlu0 0
    %109 = vperm.xlu0 %108, %v57
    %v110 = vpop.permute.xlu0 %109
    %113 = vset.pattern.permute.xlu0 0
    %114 = vperm.xlu0 %113, %v58
    %v115 = vpop.permute.xlu0 %114
    %118 = vset.pattern.permute.xlu0 0
    %119 = vperm.xlu0 %118, %v59
    %v120 = vpop.permute.xlu0 %119
    %v122 = vlaneseq
    %v123 = vshrl.u32 %v122, 7
    %v124 = vsub.s32 0, %v123
    %v125 = vrot.slane %v60, %v124
    %v126 = vmul.f32 %v105, %v125
    %v127 = vmul.f32 %v110, %v125
    %v128 = vmul.f32 %v115, %v125
    %v129 = vmul.f32 %v120, %v125
    %v130 = vadd.f32 %v100, %v126
    %v131 = vadd.f32 %v100, %v127
    %v132 = vadd.f32 %v100, %v128
    %v133 = vadd.f32 %v100, %v129
    %134 = vset.pattern.permute.xlu0 1
    %135 = vperm.xlu0 %134, %v56
    %v136 = vpop.permute.xlu0 %135
    %138 = vset.pattern.permute.xlu0 1
    %139 = vperm.xlu0 %138, %v57
    %v140 = vpop.permute.xlu0 %139
    %142 = vset.pattern.permute.xlu0 1
    %143 = vperm.xlu0 %142, %v58
    %v144 = vpop.permute.xlu0 %143
    %146 = vset.pattern.permute.xlu0 1
    %147 = vperm.xlu0 %146, %v59
    %v148 = vpop.permute.xlu0 %147
    %v150 = vlaneseq
    %v151 = vshrl.u32 %v150, 7
    %v152 = vsub.s32 1, %v151
    %v153 = vrot.slane %v60, %v152
    %v154 = vmul.f32 %v136, %v153
    %v155 = vmul.f32 %v140, %v153
    %v156 = vmul.f32 %v144, %v153
    %v157 = vmul.f32 %v148, %v153
    %v158 = vadd.f32 %v130, %v154
    %v159 = vadd.f32 %v131, %v155
    %v160 = vadd.f32 %v132, %v156
    %v161 = vadd.f32 %v133, %v157
    %162 = vset.pattern.permute.xlu0 2
    %163 = vperm.xlu0 %162, %v56
    %v164 = vpop.permute.xlu0 %163
    %166 = vset.pattern.permute.xlu0 2
    %167 = vperm.xlu0 %166, %v57
    %v168 = vpop.permute.xlu0 %167
    %170 = vset.pattern.permute.xlu0 2
    %171 = vperm.xlu0 %170, %v58
    %v172 = vpop.permute.xlu0 %171
    %174 = vset.pattern.permute.xlu0 2
    %175 = vperm.xlu0 %174, %v59
    %v176 = vpop.permute.xlu0 %175
    %v178 = vlaneseq
    %v179 = vshrl.u32 %v178, 7
    %v180 = vsub.s32 2, %v179
    %v181 = vrot.slane %v60, %v180
    %v182 = vmul.f32 %v164, %v181
    %v183 = vmul.f32 %v168, %v181
    %v184 = vmul.f32 %v172, %v181
    %v185 = vmul.f32 %v176, %v181
    %v186 = vadd.f32 %v158, %v182
    %v187 = vadd.f32 %v159, %v183
    %v188 = vadd.f32 %v160, %v184
    %v189 = vadd.f32 %v161, %v185
    %190 = vset.pattern.permute.xlu0 3
    %191 = vperm.xlu0 %190, %v56
    %v192 = vpop.permute.xlu0 %191
    %194 = vset.pattern.permute.xlu0 3
    %195 = vperm.xlu0 %194, %v57
    %v196 = vpop.permute.xlu0 %195
    %198 = vset.pattern.permute.xlu0 3
    %199 = vperm.xlu0 %198, %v58
    %v200 = vpop.permute.xlu0 %199
    %202 = vset.pattern.permute.xlu0 3
    %203 = vperm.xlu0 %202, %v59
    %v204 = vpop.permute.xlu0 %203
    %v206 = vlaneseq
    %v207 = vshrl.u32 %v206, 7
    %v208 = vsub.s32 3, %v207
    %v209 = vrot.slane %v60, %v208
    %v210 = vmul.f32 %v192, %v209
    %v211 = vmul.f32 %v196, %v209
    %v212 = vmul.f32 %v200, %v209
    %v213 = vmul.f32 %v204, %v209
    %v214 = vadd.f32 %v186, %v210
    %v215 = vadd.f32 %v187, %v211
    %v216 = vadd.f32 %v188, %v212
    %v217 = vadd.f32 %v189, %v213
    %v218 = vmax.f32 %v214, 0.0
    %v219 = vmax.f32 %v215, 0.0
    %v220 = vmax.f32 %v216, 0.0
    %v221 = vmax.f32 %v217, 0.0
    %v222 = vpack.c.bf16 %v219, %v218
    %v223 = vpack.c.bf16 %v221, %v220
    %v225 = vlaneseq
    %v226 = vshrl.u32 %v225, 7
    %v227 = vsub.s32 0, %v226
    %v228 = vrot.slane %v78, %v227
    %v246 = vunpack.c.l.b16 %v62
    %v247 = vunpack.c.l.b16 %v63
    %v248 = vunpack.c.l.b16 %v64
    %v249 = vunpack.c.l.b16 %v65
    %v250 = vunpack.c.l.b16 %v66
    %v251 = vunpack.c.l.b16 %v67
    %v252 = vunpack.c.l.b16 %v68
    %v253 = vunpack.c.l.b16 %v69
    %v254 = vunpack.c.l.b16 %v70
    %v255 = vunpack.c.l.b16 %v71
    %v256 = vunpack.c.l.b16 %v72
    %v257 = vunpack.c.l.b16 %v73
    %v258 = vunpack.c.l.b16 %v74
    %v259 = vunpack.c.l.b16 %v75
    %v260 = vunpack.c.l.b16 %v76
    %v261 = vunpack.c.l.b16 %v77
    %v262 = vpack.c.b16 %v247, %v246
    %v263 = vpack.c.b16 %v249, %v248
    %v264 = vpack.c.b16 %v251, %v250
    %v265 = vpack.c.b16 %v253, %v252
    %v266 = vpack.c.b16 %v255, %v254
    %v267 = vpack.c.b16 %v257, %v256
    %v268 = vpack.c.b16 %v259, %v258
    %v269 = vpack.c.b16 %v261, %v260
    %278 = vmatprep.subr.bf16.mxu0 0
    %279 = vmatpush1.bf16.msra.mxu0 %v262
    %280 = vmatprep.subr.bf16.mxu0 0
    %281 = vmatpush1.bf16.msra.mxu0 %v263
    %282 = vmatprep.subr.bf16.mxu0 0
    %283 = vmatpush1.bf16.msra.mxu0 %v264
    %284 = vmatprep.subr.bf16.mxu0 0
    %285 = vmatpush1.bf16.msra.mxu0 %v265
    %286 = vmatprep.subr.bf16.mxu0 0
    %287 = vmatpush1.bf16.msra.mxu0 %v266
    %288 = vmatprep.subr.bf16.mxu0 0
    %289 = vmatpush1.bf16.msra.mxu0 %v267
    %290 = vmatprep.subr.bf16.mxu0 0
    %291 = vmatpush1.bf16.msra.mxu0 %v268
    %292 = vmatprep.subr.bf16.mxu0 0
    %293 = vmatpush1.bf16.msra.mxu0 %v269
    %294 = vmatprep.subr.bf16.mxu0 0
    %295 = vmatpush1.bf16.msra.mxu0 0
    %296 = vmatprep.subr.bf16.mxu0 0
    %297 = vmatpush1.bf16.msra.mxu0 0
    %298 = vmatprep.subr.bf16.mxu0 0
    %299 = vmatpush1.bf16.msra.mxu0 0
    %300 = vmatprep.subr.bf16.mxu0 0
    %301 = vmatpush1.bf16.msra.mxu0 0
    %302 = vmatprep.subr.bf16.mxu0 0
    %303 = vmatpush1.bf16.msra.mxu0 0
    %304 = vmatprep.subr.bf16.mxu0 0
    %305 = vmatpush1.bf16.msra.mxu0 0
    %306 = vmatprep.subr.bf16.mxu0 0
    %307 = vmatpush1.bf16.msra.mxu0 0
    %308 = vmatprep.subr.bf16.mxu0 0
    %309 = vmatpush1.bf16.msra.mxu0 0
    %310 = vmatprep.mubr.bf16.mxu0 0
    %311 = vmatmul.mubr.bf16.gmra.mrb[0].mxu0 %v222
    %v312 = vpop.f32.mrb[0].mxu0
    %v313 = vadd.f32 %v228, %v312
    %v314 = vpop.f32.mrb[0].mxu0
    %v315 = vpop.f32.mrb[0].mxu0
    %v316 = vadd.f32 %v228, %v315
    %v317 = vpop.f32.mrb[0].mxu0
    %318 = vmatprep.mubr.bf16.mxu0 0
    %319 = vmatmul.mubr.bf16.gmra.mrb[0].mxu0 %v223
    %v320 = vpop.f32.mrb[0].mxu0
    %v321 = vadd.f32 %v228, %v320
    %v322 = vpop.f32.mrb[0].mxu0
    %v323 = vpop.f32.mrb[0].mxu0
    %v324 = vadd.f32 %v228, %v323
    %v325 = vpop.f32.mrb[0].mxu0
    %326 = vdwg.mxu0
    %v327 = vmax.f32 %v313, 0.0
    %v328 = vmax.f32 %v316, 0.0
    %v329 = vmax.f32 %v321, 0.0
    %v330 = vmax.f32 %v324, 0.0
    %v331 = vpack.c.bf16 %v328, %v327
    %v332 = vpack.c.bf16 %v330, %v329
    %v334 = vlaneseq
    %v335 = vshrl.u32 %v334, 7
    %v336 = vsub.s32 0, %v335
    %v337 = vrot.slane %v95, %v336
    %v355 = vunpack.c.l.b16 %v79
    %v356 = vunpack.c.l.b16 %v80
    %v357 = vunpack.c.l.b16 %v81
    %v358 = vunpack.c.l.b16 %v82
    %v359 = vunpack.c.l.b16 %v83
    %v360 = vunpack.c.l.b16 %v84
    %v361 = vunpack.c.l.b16 %v85
    %v362 = vunpack.c.l.b16 %v86
    %v363 = vunpack.c.l.b16 %v87
    %v364 = vunpack.c.l.b16 %v88
    %v365 = vunpack.c.l.b16 %v89
    %v366 = vunpack.c.l.b16 %v90
    %v367 = vunpack.c.l.b16 %v91
    %v368 = vunpack.c.l.b16 %v92
    %v369 = vunpack.c.l.b16 %v93
    %v370 = vunpack.c.l.b16 %v94
    %v371 = vpack.c.b16 %v356, %v355
    %v372 = vpack.c.b16 %v358, %v357
    %v373 = vpack.c.b16 %v360, %v359
    %v374 = vpack.c.b16 %v362, %v361
    %v375 = vpack.c.b16 %v364, %v363
    %v376 = vpack.c.b16 %v366, %v365
    %v377 = vpack.c.b16 %v368, %v367
    %v378 = vpack.c.b16 %v370, %v369
    %387 = vmatprep.subr.bf16.mxu0 0
    %388 = vmatpush1.bf16.msra.mxu0 %v371
    %389 = vmatprep.subr.bf16.mxu0 0
    %390 = vmatpush1.bf16.msra.mxu0 %v372
    %391 = vmatprep.subr.bf16.mxu0 0
    %392 = vmatpush1.bf16.msra.mxu0 %v373
    %393 = vmatprep.subr.bf16.mxu0 0
    %394 = vmatpush1.bf16.msra.mxu0 %v374
    %395 = vmatprep.subr.bf16.mxu0 0
    %396 = vmatpush1.bf16.msra.mxu0 %v375
    %397 = vmatprep.subr.bf16.mxu0 0
    %398 = vmatpush1.bf16.msra.mxu0 %v376
    %399 = vmatprep.subr.bf16.mxu0 0
    %400 = vmatpush1.bf16.msra.mxu0 %v377
    %401 = vmatprep.subr.bf16.mxu0 0
    %402 = vmatpush1.bf16.msra.mxu0 %v378
    %403 = vmatprep.subr.bf16.mxu0 0
    %404 = vmatpush1.bf16.msra.mxu0 0
    %405 = vmatprep.subr.bf16.mxu0 0
    %406 = vmatpush1.bf16.msra.mxu0 0
    %407 = vmatprep.subr.bf16.mxu0 0
    %408 = vmatpush1.bf16.msra.mxu0 0
    %409 = vmatprep.subr.bf16.mxu0 0
    %410 = vmatpush1.bf16.msra.mxu0 0
    %411 = vmatprep.subr.bf16.mxu0 0
    %412 = vmatpush1.bf16.msra.mxu0 0
    %413 = vmatprep.subr.bf16.mxu0 0
    %414 = vmatpush1.bf16.msra.mxu0 0
    %415 = vmatprep.subr.bf16.mxu0 0
    %416 = vmatpush1.bf16.msra.mxu0 0
    %417 = vmatprep.subr.bf16.mxu0 0
    %418 = vmatpush1.bf16.msra.mxu0 0
    %419 = vmatprep.mubr.bf16.mxu0 0
    %420 = vmatmul.mubr.bf16.gmra.mrb[0].mxu0 %v331
    %v421 = vpop.f32.mrb[0].mxu0
    %v422 = vadd.f32 %v337, %v421
    %v423 = vpop.f32.mrb[0].mxu0
    %v424 = vpop.f32.mrb[0].mxu0
    %v425 = vadd.f32 %v337, %v424
    %v426 = vpop.f32.mrb[0].mxu0
    %427 = vmatprep.mubr.bf16.mxu0 0
    %428 = vmatmul.mubr.bf16.gmra.mrb[0].mxu0 %v332
    %v429 = vpop.f32.mrb[0].mxu0
    %v430 = vadd.f32 %v337, %v429
    %v431 = vpop.f32.mrb[0].mxu0
    %v432 = vpop.f32.mrb[0].mxu0
    %v433 = vadd.f32 %v337, %v432
    %v434 = vpop.f32.mrb[0].mxu0
    %435 = vdwg.mxu0
    %436 = vst [vmem:[#allocation7] sm:$0xff] %v422
    %437 = vst [vmem:[#allocation7 + $0x8] sm:$0xff] %v425
    %438 = vst [vmem:[#allocation7 + $0x10] sm:$0xff] %v430
    %439 = vst [vmem:[#allocation7 + $0x18] sm:$0xff] %v433
    // Predicated region
    $region38: #{tpu_custom_call.1} parent=1 // pred_check
      _
    $region39: #{tpu_custom_call.1} parent=1 // pred_check_branch
      %441 = sbr.rel (0) target = $region41
    $region40: #{tpu_custom_call.1} parent=1 // pred_region
      %s443 = ssub.s32 512, 512
      %444 = vsyncadd [#allocation4], %s443
      %s445 = sshll.u32 [#allocation7], 4
      %s446 = int_to_ptr.vmem [resolvable:$true] %s445
      %451 = dma.vmem_to_hbm [thread:$0]  %s446, 512, %s7, [#allocation4], 128, 128, 8
    $region41: #{tpu_custom_call.1} parent=1 // pred_fallthru
      _
    // Predicated region
    $region42: #{tpu_custom_call.1} parent=1 // pred_check
      _
    $region43: #{tpu_custom_call.1} parent=1 // pred_check_branch
      %453 = sbr.rel (0) target = $region45
    $region44: #{tpu_custom_call.1} parent=1 // pred_region
      %454 = dma.done [#allocation4], 512
    $region45: #{tpu_custom_call.1} parent=1 // pred_fallthru
      _
    %455 = vsyncpa [#allocation3], 1
    %456 = vsyncpa [#allocation6], 1
    %457 = vsyncpa [#allocation4], 1

</llo_original>
